<compile_context>
chip_gen: v5e
topology: v5e:2x2
jax: 0.10.0
libtpu: 0.0.40
codegen_flags: <defaults>
</compile_context>

<pallas_src>
import functools

import jax
import jax.numpy as jnp
from jax.experimental import pallas as pl
from jax.experimental.pallas import tpu as pltpu


def afp_kernel(wbr_ref, x_ref,
               b31w1, b31b1, b31w2, b31b2, b31w3, b31b3,
               b32w1, b32b1, b32w2, b32b2,
               sew1t, seb1, sew2, seb2,
               o_ref):
    """One grid step over `block_b` batch elements.

    x_ref / o_ref: (block_b, C, L) f32.
    Conv weights: bf16, 2D ((Cout, Cin) for 1x1, (Cout, 3*Cin) tap-major for k=3);
    biases (Cout, 1) f32.  SE weights f32: sew1t (C, Ch), seb1 (1, Ch),
    sew2 (C, Ch), seb2 (C, 1).  wbr_ref: (4,) f32 softmaxed branch weights in SMEM.
    """
    block_b, _, L = x_ref.shape
    C4 = b31w1.shape[0]
    inv3 = jnp.float32(1.0 / 3.0)
    inv_L = jnp.float32(1.0 / L)

    w1 = wbr_ref[0]
    w2 = wbr_ref[1]
    w3 = wbr_ref[2]
    w4 = wbr_ref[3]

    def shift_lr(v, pad_value):
        # (rows, L) -> (value at l-1, value at l+1) with `pad_value` at the boundary.
        pad = jnp.full((v.shape[0], 1), pad_value, v.dtype)
        vl = jnp.concatenate([pad, v[:, :-1]], axis=1)
        vr = jnp.concatenate([v[:, 1:], pad], axis=1)
        return vl, vr

    def conv1x1(w_ref, b_ref, v_bf):
        return jnp.dot(w_ref[...], v_bf,
                       preferred_element_type=jnp.float32) + b_ref[...]

    def conv3(w_ref, b_ref, v):
        # One fused MXU matmul: (Cout, 3*Cin) x (3*Cin, L), operand staged in bf16.
        v_bf = v.astype(jnp.bfloat16)
        vl, vr = shift_lr(v_bf, 0.0)
        stacked = jnp.concatenate([vl, v_bf, vr], axis=0)    # tap order 0,1,2
        return jnp.dot(w_ref[...], stacked,
                       preferred_element_type=jnp.float32) + b_ref[...]

    for b in range(block_b):                      # static unroll over the batch block
        x = x_ref[b]                              # (C, L) f32

        # branch1: MaxPool1d(3,1,pad=1); branch2: AvgPool1d(3,1,pad=1) with
        # count_include_pad=True (PyTorch default), i.e. always divide by 3.
        xl_m, xr_m = shift_lr(x, -jnp.inf)
        b1 = jnp.maximum(x, jnp.maximum(xl_m, xr_m))
        xl_a, xr_a = shift_lr(x, 0.0)
        b2 = (x + xl_a + xr_a) * inv3
        acc = x * w4 + b1 * w1 + b2 * w2          # incremental accumulation

        x_bf = x.astype(jnp.bfloat16)

        # branch3_1: 1x1 conv -> k3 conv -> k3 conv   (C/4 channels)
        y = conv1x1(b31w1, b31b1, x_bf)
        y = conv3(b31w2, b31b2, y)
        y = conv3(b31w3, b31b3, y)

        # branch3_2: 1x1 conv -> k3 conv              (3C/4 channels)
        z = conv1x1(b32w1, b32b1, x_bf)
        z = conv3(b32w2, b32b2, z)

        # SE block: global mean over L (lane reduce), two tiny FC layers as
        # broadcast-multiply + cross reduces (no scratch round-trip, no N=1 matmul).
        m_y = jnp.sum(y, axis=1, keepdims=True) * inv_L           # (C4, 1)
        m_z = jnp.sum(z, axis=1, keepdims=True) * inv_L           # (3C/4, 1)
        m = jnp.concatenate([m_y, m_z], axis=0)                   # (C, 1)
        h = jnp.maximum(
            jnp.sum(sew1t[...] * m, axis=0, keepdims=True) + seb1[...], 0.0)  # (1, Ch)
        logits = jnp.sum(sew2[...] * h, axis=1, keepdims=True) + seb2[...]    # (C, 1)
        s = jax.nn.sigmoid(logits)

        # Two channel-range stores instead of materializing cat(b3_1, b3_2).
        o_ref[b, 0:C4, :] = acc[0:C4, :] + w3 * (s[0:C4, :] * y)
        o_ref[b, C4:, :] = acc[C4:, :] + w3 * (s[C4:, :] * z)


def _conv3_weight_2d(w):
    """(Cout, Cin, 3) -> (Cout, 3*Cin) with columns grouped by tap k=0,1,2."""
    co, ci, k = w.shape
    return jnp.transpose(w, (0, 2, 1)).reshape(co, k * ci)


def _pick_block_b(B, max_bb=4):
    """Largest divisor of B (<= max_bb) that keeps >=2 grid steps per TensorCore."""
    cands = [d for d in range(1, B + 1) if B % d == 0 and d <= max_bb] or [1]
    for min_steps in (4, 2, 1):        # v7x has 2 TCs -> prefer >=4 total steps
        ok = [d for d in cands if B // d >= min_steps]
        if ok:
            return max(ok)
    return 1


def _vmem_cap_bytes():
    """Per-generation VMEM budget: ~16 MiB headroom below physical capacity."""
    try:
        cap = int(pltpu.get_tpu_info().vmem_capacity_bytes)   # 64 MiB v7x, 128 MiB v5e/v6e
    except Exception:
        cap = 64 * 1024 * 1024
    return max(16 * 1024 * 1024, cap - 16 * 1024 * 1024)


@functools.partial(jax.jit, static_argnames=("block_b",))
def afp_forward(x, weight, params, *, block_b=None):
    B, C, L = x.shape
    assert C % 4 == 0 and C % 2 == 0
    C4 = C // 4
    Ch = int(C * 0.5)

    if block_b is None:
        block_b = _pick_block_b(B)
    assert B % block_b == 0
    nb = B // block_b

    x = x.astype(jnp.float32)
    # Numerically-stable branch softmax, passed once via SMEM.
    w_soft = jax.nn.softmax(weight.astype(jnp.float32).reshape(4))

    (b31w1, b31b1, b31w2, b31b2, b31w3, b31b3,
     b32w1, b32b1, b32w2, b32b2, sew1, seb1, sew2, seb2) = params

    bf16 = lambda a: a.astype(jnp.bfloat16)
    f32 = lambda a: a.astype(jnp.float32)
    kernel_params = (
        bf16(b31w1), f32(b31b1),
        bf16(_conv3_weight_2d(b31w2)), f32(b31b2),
        bf16(_conv3_weight_2d(b31w3)), f32(b31b3),
        bf16(b32w1), f32(b32b1),
        bf16(_conv3_weight_2d(b32w2)), f32(b32b2),
        f32(sew1).T, f32(seb1).reshape(1, Ch),     # SE FC1 as (C, Ch) weights + row bias
        f32(sew2), f32(seb2),                      # SE FC2 as (C, Ch) weights + col bias
    )
    weight_specs = [pl.BlockSpec(p.shape, lambda i: (0, 0)) for p in kernel_params]

    slab_bytes = block_b * C * L * 4
    w_bytes = sum(int(p.size) * p.dtype.itemsize for p in kernel_params)
    vmem_limit = int(min(_vmem_cap_bytes(),
                         max(8 * 1024 * 1024, 2 * w_bytes + 16 * slab_bytes)))

    fn = pl.pallas_call(
        afp_kernel,
        out_shape=jax.ShapeDtypeStruct((B, C, L), jnp.float32),
        grid=(nb,),
        in_specs=[pl.BlockSpec(memory_space=pltpu.MemorySpace.SMEM),       # branch softmax
                  pl.BlockSpec((block_b, C, L), lambda i: (i, 0, 0))]      # x block
                 + weight_specs,
        out_specs=pl.BlockSpec((block_b, C, L), lambda i: (i, 0, 0)),
        compiler_params=pltpu.CompilerParams(
            dimension_semantics=("parallel",),
            vmem_limit_bytes=vmem_limit),
    )
    # TODO(synk): for very large L, add an L-tile grid axis with 1-element halos and a
    # two-phase SE mean; here each grid step consumes the full length-L slab.
    return fn(w_soft, x, *kernel_params)


def init_params(key, C):
    """Synthetic params in PyTorch layouts (Conv1d: (Cout,Cin,k); Linear: (out,in))."""
    C4, C34, Ch = C // 4, (3 * C) // 4, int(C * 0.5)
    keys = jax.random.split(key, 14)

    def u(k, shape, fan_in):
        bound = 1.0 / (fan_in ** 0.5)
        return jax.random.uniform(k, shape, jnp.float32, -bound, bound)

    return (
        u(keys[0], (C4, C), C),             u(keys[1], (C4, 1), C),
        u(keys[2], (C4, C4, 3), C4 * 3),    u(keys[3], (C4, 1), C4 * 3),
        u(keys[4], (C4, C4, 3), C4 * 3),    u(keys[5], (C4, 1), C4 * 3),
        u(keys[6], (C34, C), C),            u(keys[7], (C34, 1), C),
        u(keys[8], (C34, C34, 3), C34 * 3), u(keys[9], (C34, 1), C34 * 3),
        u(keys[10], (Ch, C), C),            u(keys[11], (Ch, 1), C),
        u(keys[12], (C, Ch), Ch),           u(keys[13], (C, 1), Ch),
    )


def afp_reference(x, weight, params):
    """Pure-JAX f32 reference of the PyTorch AFP forward (for verification)."""
    (b31w1, b31b1, b31w2, b31b2, b31w3, b31b3,
     b32w1, b32b1, b32w2, b32b2, sew1, seb1, sew2, seb2) = params
    B, C, L = x.shape

    def pool_max(v):
        vp = jnp.pad(v, ((0, 0), (0, 0), (1, 1)), constant_values=-jnp.inf)
        return jnp.maximum(jnp.maximum(vp[:, :, 0:L], vp[:, :, 1:L + 1]),
                           vp[:, :, 2:L + 2])

    def pool_avg(v):
        vp = jnp.pad(v, ((0, 0), (0, 0), (1, 1)))
        return (vp[:, :, 0:L] + vp[:, :, 1:L + 1] + vp[:, :, 2:L + 2]) / 3.0

    def conv1x1(v, w, b):
        return jnp.einsum("oc,bcl->bol", w, v) + b[None]

    def conv3(v, w, b):
        vp = jnp.pad(v, ((0, 0), (0, 0), (1, 1)))
        y = (jnp.einsum("oc,bcl->bol", w[:, :, 0], vp[:, :, 0:L])
             + jnp.einsum("oc,bcl->bol", w[:, :, 1], vp[:, :, 1:L + 1])
             + jnp.einsum("oc,bcl->bol", w[:, :, 2], vp[:, :, 2:L + 2]))
        return y + b[None]

    b1 = pool_max(x)
    b2 = pool_avg(x)
    y = conv1x1(x, b31w1, b31b1)
    y = conv3(y, b31w2, b31b2)
    y = conv3(y, b31w3, b31b3)
    z = conv1x1(x, b32w1, b32b1)
    z = conv3(z, b32w2, b32b2)
    b3c = jnp.concatenate([y, z], axis=1)
    m = jnp.mean(b3c, axis=2)                               # (B, C)
    h = jnp.maximum(m @ sew1.T + seb1[:, 0], 0.0)
    s = jax.nn.sigmoid(h @ sew2.T + seb2[:, 0])             # (B, C)
    b3 = s[:, :, None] * b3c
    w = jax.nn.softmax(weight)
    return w[0] * b1 + w[1] * b2 + w[2] * b3 + w[3] * x


if __name__ == "__main__":
    key = jax.random.PRNGKey(0)
    kx, kw, kp = jax.random.split(key, 3)
    B, C, L = 4, 8, 128           # C divisible by 4 (C/4, 3C/4) and by 2 (SE hidden)
    x = jax.random.normal(kx, (B, C, L), dtype=jnp.float32)
    weight = jax.random.normal(kw, (4,), dtype=jnp.float32)
    params = init_params(kp, C)

    out = jax.block_until_ready(afp_forward(x, weight, params))
    assert out.shape == (B, C, L)

    ref = afp_reference(x, weight, params)
    err = float(jnp.max(jnp.abs(out - ref)))
    # bf16 conv-matmul operands -> small numeric drift; structural bugs would be O(1).
    assert err < 0.15, f"kernel/reference mismatch: max abs err = {err}"
    print("KERNEL_OK")
</pallas_src>

<mosaic_0001>
module attributes {stable_mosaic.version = 11 : i64} {
  func.func @afp_kernel(%arg0: i32, %arg1: memref<4xf32, #tpu.memory_space<smem>>, %arg2: memref<1x8x128xf32, #tpu.memory_space<vmem>>, %arg3: memref<2x8xbf16, #tpu.memory_space<vmem>>, %arg4: memref<2x1xf32, #tpu.memory_space<vmem>>, %arg5: memref<2x6xbf16, #tpu.memory_space<vmem>>, %arg6: memref<2x1xf32, #tpu.memory_space<vmem>>, %arg7: memref<2x6xbf16, #tpu.memory_space<vmem>>, %arg8: memref<2x1xf32, #tpu.memory_space<vmem>>, %arg9: memref<6x8xbf16, #tpu.memory_space<vmem>>, %arg10: memref<6x1xf32, #tpu.memory_space<vmem>>, %arg11: memref<6x18xbf16, #tpu.memory_space<vmem>>, %arg12: memref<6x1xf32, #tpu.memory_space<vmem>>, %arg13: memref<8x4xf32, #tpu.memory_space<vmem>>, %arg14: memref<1x4xf32, #tpu.memory_space<vmem>>, %arg15: memref<8x4xf32, #tpu.memory_space<vmem>>, %arg16: memref<8x1xf32, #tpu.memory_space<vmem>>, %arg17: memref<1x8x128xf32, #tpu.memory_space<vmem>>) attributes {dimension_semantics = [#tpu.dimension_semantics<parallel>], iteration_bounds = array<i64: 4>, scalar_prefetch = 0 : i64, scratch_operands = 0 : i64, tpu.core_type = #tpu.core_type<tc>, window_params = [{transform_indices = @transform_0, window_bounds = array<i64: 4>}, {transform_indices = @transform_1, window_bounds = array<i64: 1, 8, 128>}, {pipeline_mode = #tpu.pipeline_mode<synchronous>, transform_indices = @transform_2, window_bounds = array<i64: 2, 8>}, {pipeline_mode = #tpu.pipeline_mode<synchronous>, transform_indices = @transform_3, window_bounds = array<i64: 2, 1>}, {pipeline_mode = #tpu.pipeline_mode<synchronous>, transform_indices = @transform_4, window_bounds = array<i64: 2, 6>}, {pipeline_mode = #tpu.pipeline_mode<synchronous>, transform_indices = @transform_5, window_bounds = array<i64: 2, 1>}, {pipeline_mode = #tpu.pipeline_mode<synchronous>, transform_indices = @transform_6, window_bounds = array<i64: 2, 6>}, {pipeline_mode = #tpu.pipeline_mode<synchronous>, transform_indices = @transform_7, window_bounds = array<i64: 2, 1>}, {pipeline_mode = #tpu.pipeline_mode<synchronous>, transform_indices = @transform_8, window_bounds = array<i64: 6, 8>}, {pipeline_mode = #tpu.pipeline_mode<synchronous>, transform_indices = @transform_9, window_bounds = array<i64: 6, 1>}, {pipeline_mode = #tpu.pipeline_mode<synchronous>, transform_indices = @transform_10, window_bounds = array<i64: 6, 18>}, {pipeline_mode = #tpu.pipeline_mode<synchronous>, transform_indices = @transform_11, window_bounds = array<i64: 6, 1>}, {pipeline_mode = #tpu.pipeline_mode<synchronous>, transform_indices = @transform_12, window_bounds = array<i64: 8, 4>}, {pipeline_mode = #tpu.pipeline_mode<synchronous>, transform_indices = @transform_13, window_bounds = array<i64: 1, 4>}, {pipeline_mode = #tpu.pipeline_mode<synchronous>, transform_indices = @transform_14, window_bounds = array<i64: 8, 4>}, {pipeline_mode = #tpu.pipeline_mode<synchronous>, transform_indices = @transform_15, window_bounds = array<i64: 8, 1>}, {transform_indices = @transform_16, window_bounds = array<i64: 1, 8, 128>}]} {
    %c0 = arith.constant 0 : index
    %0 = memref.load %arg1[%c0] : memref<4xf32, #tpu.memory_space<smem>>
    %c1 = arith.constant 1 : index
    %1 = memref.load %arg1[%c1] : memref<4xf32, #tpu.memory_space<smem>>
    %c2 = arith.constant 2 : index
    %2 = memref.load %arg1[%c2] : memref<4xf32, #tpu.memory_space<smem>>
    %c3 = arith.constant 3 : index
    %3 = memref.load %arg1[%c3] : memref<4xf32, #tpu.memory_space<smem>>
    %c0_0 = arith.constant 0 : index
    %c0_1 = arith.constant 0 : index
    %c0_2 = arith.constant 0 : index
    %4 = vector.load %arg2[%c0_0, %c0_1, %c0_2] : memref<1x8x128xf32, #tpu.memory_space<vmem>>, vector<1x8x128xf32>
    %5 = vector.shape_cast %4 : vector<1x8x128xf32> to vector<8x128xf32>
    %cst = arith.constant 0xFF800000 : f32
    %6 = vector.broadcast %cst : f32 to vector<8x1xf32>
    %7 = vector.extract_strided_slice %5 {offsets = [0, 0], sizes = [8, 127], strides = [1, 1]} : vector<8x128xf32> to vector<8x127xf32>
    %8 = tpu.concatenate %6, %7 in 1 : vector<8x1xf32>, vector<8x127xf32> -> vector<8x128xf32>
    %9 = vector.extract_strided_slice %5 {offsets = [0, 1], sizes = [8, 127], strides = [1, 1]} : vector<8x128xf32> to vector<8x127xf32>
    %10 = tpu.concatenate %9, %6 in 1 : vector<8x127xf32>, vector<8x1xf32> -> vector<8x128xf32>
    %11 = arith.maximumf %8, %10 : vector<8x128xf32>
    %12 = arith.maximumf %5, %11 : vector<8x128xf32>
    %cst_3 = arith.constant 0.000000e+00 : f32
    %13 = vector.broadcast %cst_3 : f32 to vector<8x1xf32>
    %14 = vector.extract_strided_slice %5 {offsets = [0, 0], sizes = [8, 127], strides = [1, 1]} : vector<8x128xf32> to vector<8x127xf32>
    %15 = tpu.concatenate %13, %14 in 1 : vector<8x1xf32>, vector<8x127xf32> -> vector<8x128xf32>
    %16 = vector.extract_strided_slice %5 {offsets = [0, 1], sizes = [8, 127], strides = [1, 1]} : vector<8x128xf32> to vector<8x127xf32>
    %17 = tpu.concatenate %16, %13 in 1 : vector<8x127xf32>, vector<8x1xf32> -> vector<8x128xf32>
    %18 = arith.addf %5, %15 : vector<8x128xf32>
    %19 = arith.addf %18, %17 : vector<8x128xf32>
    %cst_4 = arith.constant 0.333333343 : f32
    %20 = vector.broadcast %cst_4 : f32 to vector<8x128xf32>
    %21 = arith.mulf %19, %20 : vector<8x128xf32>
    %22 = vector.broadcast %3 : f32 to vector<8x128xf32>
    %23 = arith.mulf %5, %22 : vector<8x128xf32>
    %24 = vector.broadcast %0 : f32 to vector<8x128xf32>
    %25 = arith.mulf %12, %24 : vector<8x128xf32>
    %26 = arith.addf %23, %25 : vector<8x128xf32>
    %27 = vector.broadcast %1 : f32 to vector<8x128xf32>
    %28 = arith.mulf %21, %27 : vector<8x128xf32>
    %29 = arith.addf %26, %28 : vector<8x128xf32>
    %30 = arith.truncf %5 : vector<8x128xf32> to vector<8x128xbf16>
    %c0_5 = arith.constant 0 : index
    %c0_6 = arith.constant 0 : index
    %31 = vector.load %arg3[%c0_5, %c0_6] : memref<2x8xbf16, #tpu.memory_space<vmem>>, vector<2x8xbf16>
    %cst_7 = arith.constant dense<0.000000e+00> : vector<2x128xf32>
    %32 = tpu.matmul %31, %30, %cst_7 {dimension_numbers = #tpu.dot_dimension_numbers<[1], [0], [0], [1], [0, 0, 1, 1], [], []>} : vector<2x8xbf16>, vector<8x128xbf16>, vector<2x128xf32> -> vector<2x128xf32>
    %c0_8 = arith.constant 0 : index
    %c0_9 = arith.constant 0 : index
    %33 = vector.load %arg4[%c0_8, %c0_9] : memref<2x1xf32, #tpu.memory_space<vmem>>, vector<2x1xf32>
    %34 = vector.broadcast %33 : vector<2x1xf32> to vector<2x128xf32>
    %35 = arith.addf %32, %34 : vector<2x128xf32>
    %36 = arith.truncf %35 : vector<2x128xf32> to vector<2x128xbf16>
    %cst_10 = arith.constant 0.000000e+00 : bf16
    %37 = vector.broadcast %cst_10 : bf16 to vector<2x1xbf16>
    %38 = vector.extract_strided_slice %36 {offsets = [0, 0], sizes = [2, 127], strides = [1, 1]} : vector<2x128xbf16> to vector<2x127xbf16>
    %39 = tpu.concatenate %37, %38 in 1 : vector<2x1xbf16>, vector<2x127xbf16> -> vector<2x128xbf16>
    %40 = vector.extract_strided_slice %36 {offsets = [0, 1], sizes = [2, 127], strides = [1, 1]} : vector<2x128xbf16> to vector<2x127xbf16>
    %41 = tpu.concatenate %40, %37 in 1 : vector<2x127xbf16>, vector<2x1xbf16> -> vector<2x128xbf16>
    %42 = tpu.concatenate %39, %36, %41 in 0 : vector<2x128xbf16>, vector<2x128xbf16>, vector<2x128xbf16> -> vector<6x128xbf16>
    %c0_11 = arith.constant 0 : index
    %c0_12 = arith.constant 0 : index
    %43 = vector.load %arg5[%c0_11, %c0_12] : memref<2x6xbf16, #tpu.memory_space<vmem>>, vector<2x6xbf16>
    %cst_13 = arith.constant dense<0.000000e+00> : vector<2x128xf32>
    %44 = tpu.matmul %43, %42, %cst_13 {dimension_numbers = #tpu.dot_dimension_numbers<[1], [0], [0], [1], [0, 0, 1, 1], [], []>} : vector<2x6xbf16>, vector<6x128xbf16>, vector<2x128xf32> -> vector<2x128xf32>
    %c0_14 = arith.constant 0 : index
    %c0_15 = arith.constant 0 : index
    %45 = vector.load %arg6[%c0_14, %c0_15] : memref<2x1xf32, #tpu.memory_space<vmem>>, vector<2x1xf32>
    %46 = vector.broadcast %45 : vector<2x1xf32> to vector<2x128xf32>
    %47 = arith.addf %44, %46 : vector<2x128xf32>
    %48 = arith.truncf %47 : vector<2x128xf32> to vector<2x128xbf16>
    %cst_16 = arith.constant 0.000000e+00 : bf16
    %49 = vector.broadcast %cst_16 : bf16 to vector<2x1xbf16>
    %50 = vector.extract_strided_slice %48 {offsets = [0, 0], sizes = [2, 127], strides = [1, 1]} : vector<2x128xbf16> to vector<2x127xbf16>
    %51 = tpu.concatenate %49, %50 in 1 : vector<2x1xbf16>, vector<2x127xbf16> -> vector<2x128xbf16>
    %52 = vector.extract_strided_slice %48 {offsets = [0, 1], sizes = [2, 127], strides = [1, 1]} : vector<2x128xbf16> to vector<2x127xbf16>
    %53 = tpu.concatenate %52, %49 in 1 : vector<2x127xbf16>, vector<2x1xbf16> -> vector<2x128xbf16>
    %54 = tpu.concatenate %51, %48, %53 in 0 : vector<2x128xbf16>, vector<2x128xbf16>, vector<2x128xbf16> -> vector<6x128xbf16>
    %c0_17 = arith.constant 0 : index
    %c0_18 = arith.constant 0 : index
    %55 = vector.load %arg7[%c0_17, %c0_18] : memref<2x6xbf16, #tpu.memory_space<vmem>>, vector<2x6xbf16>
    %cst_19 = arith.constant dense<0.000000e+00> : vector<2x128xf32>
    %56 = tpu.matmul %55, %54, %cst_19 {dimension_numbers = #tpu.dot_dimension_numbers<[1], [0], [0], [1], [0, 0, 1, 1], [], []>} : vector<2x6xbf16>, vector<6x128xbf16>, vector<2x128xf32> -> vector<2x128xf32>
    %c0_20 = arith.constant 0 : index
    %c0_21 = arith.constant 0 : index
    %57 = vector.load %arg8[%c0_20, %c0_21] : memref<2x1xf32, #tpu.memory_space<vmem>>, vector<2x1xf32>
    %58 = vector.broadcast %57 : vector<2x1xf32> to vector<2x128xf32>
    %59 = arith.addf %56, %58 : vector<2x128xf32>
    %c0_22 = arith.constant 0 : index
    %c0_23 = arith.constant 0 : index
    %60 = vector.load %arg9[%c0_22, %c0_23] : memref<6x8xbf16, #tpu.memory_space<vmem>>, vector<6x8xbf16>
    %cst_24 = arith.constant dense<0.000000e+00> : vector<6x128xf32>
    %61 = tpu.matmul %60, %30, %cst_24 {dimension_numbers = #tpu.dot_dimension_numbers<[1], [0], [0], [1], [0, 0, 1, 1], [], []>} : vector<6x8xbf16>, vector<8x128xbf16>, vector<6x128xf32> -> vector<6x128xf32>
    %c0_25 = arith.constant 0 : index
    %c0_26 = arith.constant 0 : index
    %62 = vector.load %arg10[%c0_25, %c0_26] : memref<6x1xf32, #tpu.memory_space<vmem>>, vector<6x1xf32>
    %63 = vector.broadcast %62 : vector<6x1xf32> to vector<6x128xf32>
    %64 = arith.addf %61, %63 : vector<6x128xf32>
    %65 = arith.truncf %64 : vector<6x128xf32> to vector<6x128xbf16>
    %cst_27 = arith.constant 0.000000e+00 : bf16
    %66 = vector.broadcast %cst_27 : bf16 to vector<6x1xbf16>
    %67 = vector.extract_strided_slice %65 {offsets = [0, 0], sizes = [6, 127], strides = [1, 1]} : vector<6x128xbf16> to vector<6x127xbf16>
    %68 = tpu.concatenate %66, %67 in 1 : vector<6x1xbf16>, vector<6x127xbf16> -> vector<6x128xbf16>
    %69 = vector.extract_strided_slice %65 {offsets = [0, 1], sizes = [6, 127], strides = [1, 1]} : vector<6x128xbf16> to vector<6x127xbf16>
    %70 = tpu.concatenate %69, %66 in 1 : vector<6x127xbf16>, vector<6x1xbf16> -> vector<6x128xbf16>
    %71 = tpu.concatenate %68, %65, %70 in 0 : vector<6x128xbf16>, vector<6x128xbf16>, vector<6x128xbf16> -> vector<18x128xbf16>
    %c0_28 = arith.constant 0 : index
    %c0_29 = arith.constant 0 : index
    %72 = vector.load %arg11[%c0_28, %c0_29] : memref<6x18xbf16, #tpu.memory_space<vmem>>, vector<6x18xbf16>
    %cst_30 = arith.constant dense<0.000000e+00> : vector<6x128xf32>
    %73 = tpu.matmul %72, %71, %cst_30 {dimension_numbers = #tpu.dot_dimension_numbers<[1], [0], [0], [1], [0, 0, 1, 1], [], []>} : vector<6x18xbf16>, vector<18x128xbf16>, vector<6x128xf32> -> vector<6x128xf32>
    %c0_31 = arith.constant 0 : index
    %c0_32 = arith.constant 0 : index
    %74 = vector.load %arg12[%c0_31, %c0_32] : memref<6x1xf32, #tpu.memory_space<vmem>>, vector<6x1xf32>
    %75 = vector.broadcast %74 : vector<6x1xf32> to vector<6x128xf32>
    %76 = arith.addf %73, %75 : vector<6x128xf32>
    %cst_33 = arith.constant dense<0.000000e+00> : vector<2xf32>
    %77 = vector.multi_reduction <add>, %59, %cst_33 [1] : vector<2x128xf32> to vector<2xf32>
    %78 = vector.shape_cast %77 : vector<2xf32> to vector<2x1xf32>
    %cst_34 = arith.constant 7.812500e-03 : f32
    %79 = vector.broadcast %cst_34 : f32 to vector<2x1xf32>
    %80 = arith.mulf %78, %79 : vector<2x1xf32>
    %cst_35 = arith.constant dense<0.000000e+00> : vector<6xf32>
    %81 = vector.multi_reduction <add>, %76, %cst_35 [1] : vector<6x128xf32> to vector<6xf32>
    %82 = vector.shape_cast %81 : vector<6xf32> to vector<6x1xf32>
    %cst_36 = arith.constant 7.812500e-03 : f32
    %83 = vector.broadcast %cst_36 : f32 to vector<6x1xf32>
    %84 = arith.mulf %82, %83 : vector<6x1xf32>
    %85 = tpu.concatenate %80, %84 in 0 : vector<2x1xf32>, vector<6x1xf32> -> vector<8x1xf32>
    %c0_37 = arith.constant 0 : index
    %c0_38 = arith.constant 0 : index
    %86 = vector.load %arg13[%c0_37, %c0_38] : memref<8x4xf32, #tpu.memory_space<vmem>>, vector<8x4xf32>
    %87 = vector.broadcast %85 : vector<8x1xf32> to vector<8x4xf32>
    %88 = arith.mulf %86, %87 : vector<8x4xf32>
    %cst_39 = arith.constant dense<0.000000e+00> : vector<4xf32>
    %89 = vector.multi_reduction <add>, %88, %cst_39 [0] : vector<8x4xf32> to vector<4xf32>
    %90 = vector.shape_cast %89 : vector<4xf32> to vector<1x4xf32>
    %c0_40 = arith.constant 0 : index
    %c0_41 = arith.constant 0 : index
    %91 = vector.load %arg14[%c0_40, %c0_41] : memref<1x4xf32, #tpu.memory_space<vmem>>, vector<1x4xf32>
    %92 = arith.addf %90, %91 : vector<1x4xf32>
    %cst_42 = arith.constant 0.000000e+00 : f32
    %93 = vector.broadcast %cst_42 : f32 to vector<1x4xf32>
    %94 = arith.maximumf %92, %93 : vector<1x4xf32>
    %c0_43 = arith.constant 0 : index
    %c0_44 = arith.constant 0 : index
    %95 = vector.load %arg15[%c0_43, %c0_44] : memref<8x4xf32, #tpu.memory_space<vmem>>, vector<8x4xf32>
    %96 = vector.broadcast %94 : vector<1x4xf32> to vector<8x4xf32>
    %97 = arith.mulf %95, %96 : vector<8x4xf32>
    %cst_45 = arith.constant dense<0.000000e+00> : vector<8xf32>
    %98 = vector.multi_reduction <add>, %97, %cst_45 [1] : vector<8x4xf32> to vector<8xf32>
    %99 = vector.shape_cast %98 : vector<8xf32> to vector<8x1xf32>
    %c0_46 = arith.constant 0 : index
    %c0_47 = arith.constant 0 : index
    %100 = vector.load %arg16[%c0_46, %c0_47] : memref<8x1xf32, #tpu.memory_space<vmem>>, vector<8x1xf32>
    %101 = arith.addf %99, %100 : vector<8x1xf32>
    %102 = arith.negf %101 : vector<8x1xf32>
    %103 = math.exp %102 : vector<8x1xf32>
    %cst_48 = arith.constant 1.000000e+00 : f32
    %104 = vector.broadcast %cst_48 : f32 to vector<8x1xf32>
    %105 = arith.addf %104, %103 : vector<8x1xf32>
    %106 = arith.divf %104, %105 : vector<8x1xf32>
    %107 = vector.extract_strided_slice %29 {offsets = [0, 0], sizes = [2, 128], strides = [1, 1]} : vector<8x128xf32> to vector<2x128xf32>
    %108 = vector.extract_strided_slice %106 {offsets = [0, 0], sizes = [2, 1], strides = [1, 1]} : vector<8x1xf32> to vector<2x1xf32>
    %109 = vector.broadcast %108 : vector<2x1xf32> to vector<2x128xf32>
    %110 = arith.mulf %109, %59 : vector<2x128xf32>
    %111 = vector.broadcast %2 : f32 to vector<2x128xf32>
    %112 = arith.mulf %111, %110 : vector<2x128xf32>
    %113 = arith.addf %107, %112 : vector<2x128xf32>
    %c0_49 = arith.constant 0 : index
    %c0_50 = arith.constant 0 : index
    %c0_51 = arith.constant 0 : index
    %114 = vector.load %arg17[%c0_49, %c0_50, %c0_51] : memref<1x8x128xf32, #tpu.memory_space<vmem>>, vector<1x2x128xf32>
    %115 = vector.shape_cast %114 : vector<1x2x128xf32> to vector<2x128xf32>
    %116 = vector.shape_cast %113 : vector<2x128xf32> to vector<1x2x128xf32>
    tpu.vector_store %arg17[%c0_49, %c0_50, %c0_51], %116 {strides = array<i32>} : memref<1x8x128xf32, #tpu.memory_space<vmem>>, vector<1x2x128xf32>,
    %117 = vector.extract_strided_slice %29 {offsets = [2, 0], sizes = [6, 128], strides = [1, 1]} : vector<8x128xf32> to vector<6x128xf32>
    %118 = vector.extract_strided_slice %106 {offsets = [2, 0], sizes = [6, 1], strides = [1, 1]} : vector<8x1xf32> to vector<6x1xf32>
    %119 = vector.broadcast %118 : vector<6x1xf32> to vector<6x128xf32>
    %120 = arith.mulf %119, %76 : vector<6x128xf32>
    %121 = vector.broadcast %2 : f32 to vector<6x128xf32>
    %122 = arith.mulf %121, %120 : vector<6x128xf32>
    %123 = arith.addf %117, %122 : vector<6x128xf32>
    %c0_52 = arith.constant 0 : index
    %c2_53 = arith.constant 2 : index
    %c0_54 = arith.constant 0 : index
    %124 = vector.load %arg17[%c0_52, %c2_53, %c0_54] : memref<1x8x128xf32, #tpu.memory_space<vmem>>, vector<1x6x128xf32>
    %125 = vector.shape_cast %124 : vector<1x6x128xf32> to vector<6x128xf32>
    %126 = vector.shape_cast %123 : vector<6x128xf32> to vector<1x6x128xf32>
    tpu.vector_store %arg17[%c0_52, %c2_53, %c0_54], %126 {strides = array<i32>} : memref<1x8x128xf32, #tpu.memory_space<vmem>>, vector<1x6x128xf32>,
    return
  }
  func.func @transform_0(%arg0: i32) -> i32 {
    %c0_i32 = arith.constant 0 : i32
    %c0_i32_0 = arith.constant 0 : i32
    return %c0_i32 : i32
  }
  func.func @transform_1(%arg0: i32) -> (i32, i32, i32) {
    %c0_i32 = arith.constant 0 : i32
    %c0_i32_0 = arith.constant 0 : i32
    %c0_i32_1 = arith.constant 0 : i32
    return %arg0, %c0_i32, %c0_i32_0 : i32, i32, i32
  }
  func.func @transform_2(%arg0: i32) -> (i32, i32) {
    %c0_i32 = arith.constant 0 : i32
    %c0_i32_0 = arith.constant 0 : i32
    %c0_i32_1 = arith.constant 0 : i32
    return %c0_i32, %c0_i32_0 : i32, i32
  }
  func.func @transform_3(%arg0: i32) -> (i32, i32) {
    %c0_i32 = arith.constant 0 : i32
    %c0_i32_0 = arith.constant 0 : i32
    %c0_i32_1 = arith.constant 0 : i32
    return %c0_i32, %c0_i32_0 : i32, i32
  }
  func.func @transform_4(%arg0: i32) -> (i32, i32) {
    %c0_i32 = arith.constant 0 : i32
    %c0_i32_0 = arith.constant 0 : i32
    %c0_i32_1 = arith.constant 0 : i32
    return %c0_i32, %c0_i32_0 : i32, i32
  }
  func.func @transform_5(%arg0: i32) -> (i32, i32) {
    %c0_i32 = arith.constant 0 : i32
    %c0_i32_0 = arith.constant 0 : i32
    %c0_i32_1 = arith.constant 0 : i32
    return %c0_i32, %c0_i32_0 : i32, i32
  }
  func.func @transform_6(%arg0: i32) -> (i32, i32) {
    %c0_i32 = arith.constant 0 : i32
    %c0_i32_0 = arith.constant 0 : i32
    %c0_i32_1 = arith.constant 0 : i32
    return %c0_i32, %c0_i32_0 : i32, i32
  }
  func.func @transform_7(%arg0: i32) -> (i32, i32) {
    %c0_i32 = arith.constant 0 : i32
    %c0_i32_0 = arith.constant 0 : i32
    %c0_i32_1 = arith.constant 0 : i32
    return %c0_i32, %c0_i32_0 : i32, i32
  }
  func.func @transform_8(%arg0: i32) -> (i32, i32) {
    %c0_i32 = arith.constant 0 : i32
    %c0_i32_0 = arith.constant 0 : i32
    %c0_i32_1 = arith.constant 0 : i32
    return %c0_i32, %c0_i32_0 : i32, i32
  }
  func.func @transform_9(%arg0: i32) -> (i32, i32) {
    %c0_i32 = arith.constant 0 : i32
    %c0_i32_0 = arith.constant 0 : i32
    %c0_i32_1 = arith.constant 0 : i32
    return %c0_i32, %c0_i32_0 : i32, i32
  }
  func.func @transform_10(%arg0: i32) -> (i32, i32) {
    %c0_i32 = arith.constant 0 : i32
    %c0_i32_0 = arith.constant 0 : i32
    %c0_i32_1 = arith.constant 0 : i32
    return %c0_i32, %c0_i32_0 : i32, i32
  }
  func.func @transform_11(%arg0: i32) -> (i32, i32) {
    %c0_i32 = arith.constant 0 : i32
    %c0_i32_0 = arith.constant 0 : i32
    %c0_i32_1 = arith.constant 0 : i32
    return %c0_i32, %c0_i32_0 : i32, i32
  }
  func.func @transform_12(%arg0: i32) -> (i32, i32) {
    %c0_i32 = arith.constant 0 : i32
    %c0_i32_0 = arith.constant 0 : i32
    %c0_i32_1 = arith.constant 0 : i32
    return %c0_i32, %c0_i32_0 : i32, i32
  }
  func.func @transform_13(%arg0: i32) -> (i32, i32) {
    %c0_i32 = arith.constant 0 : i32
    %c0_i32_0 = arith.constant 0 : i32
    %c0_i32_1 = arith.constant 0 : i32
    return %c0_i32, %c0_i32_0 : i32, i32
  }
  func.func @transform_14(%arg0: i32) -> (i32, i32) {
    %c0_i32 = arith.constant 0 : i32
    %c0_i32_0 = arith.constant 0 : i32
    %c0_i32_1 = arith.constant 0 : i32
    return %c0_i32, %c0_i32_0 : i32, i32
  }
  func.func @transform_15(%arg0: i32) -> (i32, i32) {
    %c0_i32 = arith.constant 0 : i32
    %c0_i32_0 = arith.constant 0 : i32
    %c0_i32_1 = arith.constant 0 : i32
    return %c0_i32, %c0_i32_0 : i32, i32
  }
  func.func @transform_16(%arg0: i32) -> (i32, i32, i32) {
    %c0_i32 = arith.constant 0 : i32
    %c0_i32_0 = arith.constant 0 : i32
    %c0_i32_1 = arith.constant 0 : i32
    return %arg0, %c0_i32, %c0_i32_0 : i32, i32, i32
  }
}

</mosaic_0001>

<llo_original>
// kernel: afp_forward.1
$region0: #{afp_forward.1}
  #allocation0 [shape = 'u32[]', space=smem, size = 0x4, offset = 0x4, fixed_abs, tag = 'smem constant byte address 0x4 - core index']
  #allocation1 [shape = 'u32[72,128]{1,0:T(1,128)}', space=vmem, size = 0x9000, scoped, tag = 'internal scratch']
  %s0 = inlined_call_operand.vmem [shape: f32[4], index: 0, kind: input, shape index: {}]
  %s1 = inlined_call_operand.vmem [shape: f32[4,8,128], index: 1, kind: input, shape index: {}]
  %s2 = inlined_call_operand.vmem [shape: bf16[2,8], index: 2, kind: input, shape index: {}]
  %s3 = inlined_call_operand.vmem [shape: f32[2,1], index: 3, kind: input, shape index: {}]
  %s4 = inlined_call_operand.vmem [shape: bf16[2,6], index: 4, kind: input, shape index: {}]
  %s5 = inlined_call_operand.vmem [shape: f32[2,1], index: 5, kind: input, shape index: {}]
  %s6 = inlined_call_operand.vmem [shape: bf16[2,6], index: 6, kind: input, shape index: {}]
  %s7 = inlined_call_operand.vmem [shape: f32[2,1], index: 7, kind: input, shape index: {}]
  %s8 = inlined_call_operand.vmem [shape: bf16[6,8], index: 8, kind: input, shape index: {}]
  %s9 = inlined_call_operand.vmem [shape: f32[6,1], index: 9, kind: input, shape index: {}]
  %s10 = inlined_call_operand.vmem [shape: bf16[6,18], index: 10, kind: input, shape index: {}]
  %s11 = inlined_call_operand.vmem [shape: f32[6,1], index: 11, kind: input, shape index: {}]
  %s12 = inlined_call_operand.vmem [shape: f32[8,4], index: 12, kind: input, shape index: {}]
  %s13 = inlined_call_operand.vmem [shape: f32[1,4], index: 13, kind: input, shape index: {}]
  %s14 = inlined_call_operand.vmem [shape: f32[8,4], index: 14, kind: input, shape index: {}]
  %s15 = inlined_call_operand.vmem [shape: f32[8,1], index: 15, kind: input, shape index: {}]
  %s16 = inlined_call_operand.hbm [shape: f32[4,8,128], index: 16, kind: output, shape index: {}]
  %s17 = sld [smem:[#allocation0]]
  $region101: #{afp_forward.1} parent=0
    _
  %s19 = ssub.s32 1, %s17
  %s20 = scalar_select 0, %s19, %s17
  $region1: #{afp_forward.1} parent=0
    #allocation2 [shape = 'u8[512]{0}', space=smem, size = 0x200, scoped, tag = 'input window, operand 0, single buffered']
    #allocation3 [shape = 's32[2]{0}', space=sflag, size = 0x8, scoped, tag = 'scoped memory for afp_forward.1']
    #allocation4 [shape = 's32[2]{0}', space=sflag, size = 0x8, scoped, tag = 'scoped memory for afp_forward.1']
    #allocation5 [shape = 'u8[8192]{0}', space=vmem, size = 0x2000, scoped, tag = 'output window, operand 0']
    %21 = vsyncpa [#allocation4], 0
    %22 = vsyncpa [#allocation3], 0
    %s23 = scalar_lea.sflag [#allocation3], 1
    %24 = vsyncpa %s23, 0
    loop: start=0, step=1, limit=6
    $region2: #{afp_forward.1} parent=1 // loop_pre_header
      _
    $region3: #{afp_forward.1} parent=1 // loop_header
      %s26 = sphi 0, %s30
      %p27 = scmp.ge.s32.totalorder %s26, 6
      %s34 = sphi 0, %s34
      %s36 = sphi 0, %s34
      %s37 = sphi 0, %s36
      %s51 = sphi 0, %s37
      %s57 = sphi 0, %s59
      %s60 = sphi 0, %s57
      %s61 = sphi 0, %s60
      %s77 = sphi 0, %s61
      %s81 = sphi 0, %s81
      %s83 = sphi 0, %s81
      %s84 = sphi 0, %s83
      %s98 = sphi 0, %s84
      %s102 = sphi 0, %s102
      %s104 = sphi 0, %s102
      %s105 = sphi 0, %s104
      %s119 = sphi 0, %s105
      %s123 = sphi 0, %s123
      %s125 = sphi 0, %s123
      %s126 = sphi 0, %s125
      %s140 = sphi 0, %s126
      %s144 = sphi 0, %s144
      %s146 = sphi 0, %s144
      %s147 = sphi 0, %s146
      %s161 = sphi 0, %s147
      %s165 = sphi 0, %s165
      %s167 = sphi 0, %s165
      %s168 = sphi 0, %s167
      %s182 = sphi 0, %s168
      %s186 = sphi 0, %s186
      %s188 = sphi 0, %s186
      %s189 = sphi 0, %s188
      %s203 = sphi 0, %s189
      %s207 = sphi 0, %s207
      %s209 = sphi 0, %s207
      %s210 = sphi 0, %s209
      %s224 = sphi 0, %s210
      %s228 = sphi 0, %s228
      %s230 = sphi 0, %s228
      %s231 = sphi 0, %s230
      %s245 = sphi 0, %s231
      %s249 = sphi 0, %s249
      %s251 = sphi 0, %s249
      %s252 = sphi 0, %s251
      %s266 = sphi 0, %s252
      %s270 = sphi 0, %s270
      %s272 = sphi 0, %s270
      %s273 = sphi 0, %s272
      %s287 = sphi 0, %s273
      %s291 = sphi 0, %s291
      %s293 = sphi 0, %s291
      %s294 = sphi 0, %s293
      %s308 = sphi 0, %s294
      %s312 = sphi 0, %s312
      %s314 = sphi 0, %s312
      %s315 = sphi 0, %s314
      %s329 = sphi 0, %s315
      %s333 = sphi 0, %s333
      %s335 = sphi 0, %s333
      %s336 = sphi 0, %s335
      %s350 = sphi 0, %s336
      %s354 = sphi 0, %s354
      %s356 = sphi 0, %s354
      %s357 = sphi 0, %s356
      %s371 = sphi 0, %s357
      %s377 = sphi 0, %s379
      %s380 = sphi 0, %s377
      %s381 = sphi 0, %s380
      %s397 = sphi 0, %s381
    $region4: #{afp_forward.1} parent=1 // loop_header_branch
      %29 = sbr.rel (%p27) target = $region8
    $region5: #{afp_forward.1} parent=1 // loop_body
      %s31 = ssub.s32 %s26, 1
      %s32 = ssub.s32 %s26, 2
      %s33 = sadd.s32 %s26, 1
      %s35 = sadd.s32 %s34, 1
      %p38 = scmp.eq.s32.totalorder %s26, 3
      %p39 = scmp.ne.s32.totalorder %s34, %s36
      %p40 = scmp.eq.s32.totalorder %s26, 0
      %p41 = por %p39, %p40
      %p42 = scmp.ne.s32.totalorder %s34, %s36
      %p43 = scmp.eq.s32.totalorder %s31, 3
      %p44 = por %p42, %p43
      %p45 = scmp.ne.s32.totalorder %s36, %s37
      %p46 = scmp.eq.s32.totalorder %s31, 0
      %p47 = por %p45, %p46
      %p48 = scmp.ne.s32.totalorder %s36, %s37
      %p49 = scmp.eq.s32.totalorder %s32, 3
      %p50 = por %p48, %p49
      %p52 = scmp.ne.s32.totalorder %s37, %s51
      %p53 = scmp.eq.s32.totalorder %s32, 0
      %p54 = por %p52, %p53
      %s55 = ssub.s32 %s26, %s33
      %p56 = scmp.eq.s32.totalorder %s55, 0
      %s58 = sadd.s32 %s57, 1
      %s59 = scalar_select %p56, %s57, %s58
      %p62 = pneg %p56
      %p63 = scmp.eq.s32.totalorder %s26, 3
      %p64 = por %p62, %p63
      %p65 = scmp.ne.s32.totalorder %s57, %s60
      %p66 = scmp.eq.s32.totalorder %s26, 0
      %p67 = por %p65, %p66
      %p68 = scmp.ne.s32.totalorder %s57, %s60
      %p69 = scmp.eq.s32.totalorder %s31, 3
      %p70 = por %p68, %p69
      %p71 = scmp.ne.s32.totalorder %s60, %s61
      %p72 = scmp.eq.s32.totalorder %s31, 0
      %p73 = por %p71, %p72
      %p74 = scmp.ne.s32.totalorder %s60, %s61
      %p75 = scmp.eq.s32.totalorder %s32, 3
      %p76 = por %p74, %p75
      %p78 = scmp.ne.s32.totalorder %s61, %s77
      %p79 = scmp.eq.s32.totalorder %s32, 0
      %p80 = por %p78, %p79
      %s82 = sadd.s32 %s81, 1
      %p85 = scmp.eq.s32.totalorder %s26, 3
      %p86 = scmp.ne.s32.totalorder %s81, %s83
      %p87 = scmp.eq.s32.totalorder %s26, 0
      %p88 = por %p86, %p87
      %p89 = scmp.ne.s32.totalorder %s81, %s83
      %p90 = scmp.eq.s32.totalorder %s31, 3
      %p91 = por %p89, %p90
      %p92 = scmp.ne.s32.totalorder %s83, %s84
      %p93 = scmp.eq.s32.totalorder %s31, 0
      %p94 = por %p92, %p93
      %p95 = scmp.ne.s32.totalorder %s83, %s84
      %p96 = scmp.eq.s32.totalorder %s32, 3
      %p97 = por %p95, %p96
      %p99 = scmp.ne.s32.totalorder %s84, %s98
      %p100 = scmp.eq.s32.totalorder %s32, 0
      %p101 = por %p99, %p100
      %s103 = sadd.s32 %s102, 1
      %p106 = scmp.eq.s32.totalorder %s26, 3
      %p107 = scmp.ne.s32.totalorder %s102, %s104
      %p108 = scmp.eq.s32.totalorder %s26, 0
      %p109 = por %p107, %p108
      %p110 = scmp.ne.s32.totalorder %s102, %s104
      %p111 = scmp.eq.s32.totalorder %s31, 3
      %p112 = por %p110, %p111
      %p113 = scmp.ne.s32.totalorder %s104, %s105
      %p114 = scmp.eq.s32.totalorder %s31, 0
      %p115 = por %p113, %p114
      %p116 = scmp.ne.s32.totalorder %s104, %s105
      %p117 = scmp.eq.s32.totalorder %s32, 3
      %p118 = por %p116, %p117
      %p120 = scmp.ne.s32.totalorder %s105, %s119
      %p121 = scmp.eq.s32.totalorder %s32, 0
      %p122 = por %p120, %p121
      %s124 = sadd.s32 %s123, 1
      %p127 = scmp.eq.s32.totalorder %s26, 3
      %p128 = scmp.ne.s32.totalorder %s123, %s125
      %p129 = scmp.eq.s32.totalorder %s26, 0
      %p130 = por %p128, %p129
      %p131 = scmp.ne.s32.totalorder %s123, %s125
      %p132 = scmp.eq.s32.totalorder %s31, 3
      %p133 = por %p131, %p132
      %p134 = scmp.ne.s32.totalorder %s125, %s126
      %p135 = scmp.eq.s32.totalorder %s31, 0
      %p136 = por %p134, %p135
      %p137 = scmp.ne.s32.totalorder %s125, %s126
      %p138 = scmp.eq.s32.totalorder %s32, 3
      %p139 = por %p137, %p138
      %p141 = scmp.ne.s32.totalorder %s126, %s140
      %p142 = scmp.eq.s32.totalorder %s32, 0
      %p143 = por %p141, %p142
      %s145 = sadd.s32 %s144, 1
      %p148 = scmp.eq.s32.totalorder %s26, 3
      %p149 = scmp.ne.s32.totalorder %s144, %s146
      %p150 = scmp.eq.s32.totalorder %s26, 0
      %p151 = por %p149, %p150
      %p152 = scmp.ne.s32.totalorder %s144, %s146
      %p153 = scmp.eq.s32.totalorder %s31, 3
      %p154 = por %p152, %p153
      %p155 = scmp.ne.s32.totalorder %s146, %s147
      %p156 = scmp.eq.s32.totalorder %s31, 0
      %p157 = por %p155, %p156
      %p158 = scmp.ne.s32.totalorder %s146, %s147
      %p159 = scmp.eq.s32.totalorder %s32, 3
      %p160 = por %p158, %p159
      %p162 = scmp.ne.s32.totalorder %s147, %s161
      %p163 = scmp.eq.s32.totalorder %s32, 0
      %p164 = por %p162, %p163
      %s166 = sadd.s32 %s165, 1
      %p169 = scmp.eq.s32.totalorder %s26, 3
      %p170 = scmp.ne.s32.totalorder %s165, %s167
      %p171 = scmp.eq.s32.totalorder %s26, 0
      %p172 = por %p170, %p171
      %p173 = scmp.ne.s32.totalorder %s165, %s167
      %p174 = scmp.eq.s32.totalorder %s31, 3
      %p175 = por %p173, %p174
      %p176 = scmp.ne.s32.totalorder %s167, %s168
      %p177 = scmp.eq.s32.totalorder %s31, 0
      %p178 = por %p176, %p177
      %p179 = scmp.ne.s32.totalorder %s167, %s168
      %p180 = scmp.eq.s32.totalorder %s32, 3
      %p181 = por %p179, %p180
      %p183 = scmp.ne.s32.totalorder %s168, %s182
      %p184 = scmp.eq.s32.totalorder %s32, 0
      %p185 = por %p183, %p184
      %s187 = sadd.s32 %s186, 1
      %p190 = scmp.eq.s32.totalorder %s26, 3
      %p191 = scmp.ne.s32.totalorder %s186, %s188
      %p192 = scmp.eq.s32.totalorder %s26, 0
      %p193 = por %p191, %p192
      %p194 = scmp.ne.s32.totalorder %s186, %s188
      %p195 = scmp.eq.s32.totalorder %s31, 3
      %p196 = por %p194, %p195
      %p197 = scmp.ne.s32.totalorder %s188, %s189
      %p198 = scmp.eq.s32.totalorder %s31, 0
      %p199 = por %p197, %p198
      %p200 = scmp.ne.s32.totalorder %s188, %s189
      %p201 = scmp.eq.s32.totalorder %s32, 3
      %p202 = por %p200, %p201
      %p204 = scmp.ne.s32.totalorder %s189, %s203
      %p205 = scmp.eq.s32.totalorder %s32, 0
      %p206 = por %p204, %p205
      %s208 = sadd.s32 %s207, 1
      %p211 = scmp.eq.s32.totalorder %s26, 3
      %p212 = scmp.ne.s32.totalorder %s207, %s209
      %p213 = scmp.eq.s32.totalorder %s26, 0
      %p214 = por %p212, %p213
      %p215 = scmp.ne.s32.totalorder %s207, %s209
      %p216 = scmp.eq.s32.totalorder %s31, 3
      %p217 = por %p215, %p216
      %p218 = scmp.ne.s32.totalorder %s209, %s210
      %p219 = scmp.eq.s32.totalorder %s31, 0
      %p220 = por %p218, %p219
      %p221 = scmp.ne.s32.totalorder %s209, %s210
      %p222 = scmp.eq.s32.totalorder %s32, 3
      %p223 = por %p221, %p222
      %p225 = scmp.ne.s32.totalorder %s210, %s224
      %p226 = scmp.eq.s32.totalorder %s32, 0
      %p227 = por %p225, %p226
      %s229 = sadd.s32 %s228, 1
      %p232 = scmp.eq.s32.totalorder %s26, 3
      %p233 = scmp.ne.s32.totalorder %s228, %s230
      %p234 = scmp.eq.s32.totalorder %s26, 0
      %p235 = por %p233, %p234
      %p236 = scmp.ne.s32.totalorder %s228, %s230
      %p237 = scmp.eq.s32.totalorder %s31, 3
      %p238 = por %p236, %p237
      %p239 = scmp.ne.s32.totalorder %s230, %s231
      %p240 = scmp.eq.s32.totalorder %s31, 0
      %p241 = por %p239, %p240
      %p242 = scmp.ne.s32.totalorder %s230, %s231
      %p243 = scmp.eq.s32.totalorder %s32, 3
      %p244 = por %p242, %p243
      %p246 = scmp.ne.s32.totalorder %s231, %s245
      %p247 = scmp.eq.s32.totalorder %s32, 0
      %p248 = por %p246, %p247
      %s250 = sadd.s32 %s249, 1
      %p253 = scmp.eq.s32.totalorder %s26, 3
      %p254 = scmp.ne.s32.totalorder %s249, %s251
      %p255 = scmp.eq.s32.totalorder %s26, 0
      %p256 = por %p254, %p255
      %p257 = scmp.ne.s32.totalorder %s249, %s251
      %p258 = scmp.eq.s32.totalorder %s31, 3
      %p259 = por %p257, %p258
      %p260 = scmp.ne.s32.totalorder %s251, %s252
      %p261 = scmp.eq.s32.totalorder %s31, 0
      %p262 = por %p260, %p261
      %p263 = scmp.ne.s32.totalorder %s251, %s252
      %p264 = scmp.eq.s32.totalorder %s32, 3
      %p265 = por %p263, %p264
      %p267 = scmp.ne.s32.totalorder %s252, %s266
      %p268 = scmp.eq.s32.totalorder %s32, 0
      %p269 = por %p267, %p268
      %s271 = sadd.s32 %s270, 1
      %p274 = scmp.eq.s32.totalorder %s26, 3
      %p275 = scmp.ne.s32.totalorder %s270, %s272
      %p276 = scmp.eq.s32.totalorder %s26, 0
      %p277 = por %p275, %p276
      %p278 = scmp.ne.s32.totalorder %s270, %s272
      %p279 = scmp.eq.s32.totalorder %s31, 3
      %p280 = por %p278, %p279
      %p281 = scmp.ne.s32.totalorder %s272, %s273
      %p282 = scmp.eq.s32.totalorder %s31, 0
      %p283 = por %p281, %p282
      %p284 = scmp.ne.s32.totalorder %s272, %s273
      %p285 = scmp.eq.s32.totalorder %s32, 3
      %p286 = por %p284, %p285
      %p288 = scmp.ne.s32.totalorder %s273, %s287
      %p289 = scmp.eq.s32.totalorder %s32, 0
      %p290 = por %p288, %p289
      %s292 = sadd.s32 %s291, 1
      %p295 = scmp.eq.s32.totalorder %s26, 3
      %p296 = scmp.ne.s32.totalorder %s291, %s293
      %p297 = scmp.eq.s32.totalorder %s26, 0
      %p298 = por %p296, %p297
      %p299 = scmp.ne.s32.totalorder %s291, %s293
      %p300 = scmp.eq.s32.totalorder %s31, 3
      %p301 = por %p299, %p300
      %p302 = scmp.ne.s32.totalorder %s293, %s294
      %p303 = scmp.eq.s32.totalorder %s31, 0
      %p304 = por %p302, %p303
      %p305 = scmp.ne.s32.totalorder %s293, %s294
      %p306 = scmp.eq.s32.totalorder %s32, 3
      %p307 = por %p305, %p306
      %p309 = scmp.ne.s32.totalorder %s294, %s308
      %p310 = scmp.eq.s32.totalorder %s32, 0
      %p311 = por %p309, %p310
      %s313 = sadd.s32 %s312, 1
      %p316 = scmp.eq.s32.totalorder %s26, 3
      %p317 = scmp.ne.s32.totalorder %s312, %s314
      %p318 = scmp.eq.s32.totalorder %s26, 0
      %p319 = por %p317, %p318
      %p320 = scmp.ne.s32.totalorder %s312, %s314
      %p321 = scmp.eq.s32.totalorder %s31, 3
      %p322 = por %p320, %p321
      %p323 = scmp.ne.s32.totalorder %s314, %s315
      %p324 = scmp.eq.s32.totalorder %s31, 0
      %p325 = por %p323, %p324
      %p326 = scmp.ne.s32.totalorder %s314, %s315
      %p327 = scmp.eq.s32.totalorder %s32, 3
      %p328 = por %p326, %p327
      %p330 = scmp.ne.s32.totalorder %s315, %s329
      %p331 = scmp.eq.s32.totalorder %s32, 0
      %p332 = por %p330, %p331
      %s334 = sadd.s32 %s333, 1
      %p337 = scmp.eq.s32.totalorder %s26, 3
      %p338 = scmp.ne.s32.totalorder %s333, %s335
      %p339 = scmp.eq.s32.totalorder %s26, 0
      %p340 = por %p338, %p339
      %p341 = scmp.ne.s32.totalorder %s333, %s335
      %p342 = scmp.eq.s32.totalorder %s31, 3
      %p343 = por %p341, %p342
      %p344 = scmp.ne.s32.totalorder %s335, %s336
      %p345 = scmp.eq.s32.totalorder %s31, 0
      %p346 = por %p344, %p345
      %p347 = scmp.ne.s32.totalorder %s335, %s336
      %p348 = scmp.eq.s32.totalorder %s32, 3
      %p349 = por %p347, %p348
      %p351 = scmp.ne.s32.totalorder %s336, %s350
      %p352 = scmp.eq.s32.totalorder %s32, 0
      %p353 = por %p351, %p352
      %s355 = sadd.s32 %s354, 1
      %p358 = scmp.eq.s32.totalorder %s26, 3
      %p359 = scmp.ne.s32.totalorder %s354, %s356
      %p360 = scmp.eq.s32.totalorder %s26, 0
      %p361 = por %p359, %p360
      %p362 = scmp.ne.s32.totalorder %s354, %s356
      %p363 = scmp.eq.s32.totalorder %s31, 3
      %p364 = por %p362, %p363
      %p365 = scmp.ne.s32.totalorder %s356, %s357
      %p366 = scmp.eq.s32.totalorder %s31, 0
      %p367 = por %p365, %p366
      %p368 = scmp.ne.s32.totalorder %s356, %s357
      %p369 = scmp.eq.s32.totalorder %s32, 3
      %p370 = por %p368, %p369
      %p372 = scmp.ne.s32.totalorder %s357, %s371
      %p373 = scmp.eq.s32.totalorder %s32, 0
      %p374 = por %p372, %p373
      %s375 = ssub.s32 %s26, %s33
      %p376 = scmp.eq.s32.totalorder %s375, 0
      %s378 = sadd.s32 %s377, 1
      %s379 = scalar_select %p376, %s377, %s378
      %p382 = pneg %p376
      %p383 = scmp.eq.s32.totalorder %s26, 3
      %p384 = por %p382, %p383
      %p385 = scmp.ne.s32.totalorder %s377, %s380
      %p386 = scmp.eq.s32.totalorder %s26, 0
      %p387 = por %p385, %p386
      %p388 = scmp.ne.s32.totalorder %s377, %s380
      %p389 = scmp.eq.s32.totalorder %s31, 3
      %p390 = por %p388, %p389
      %p391 = scmp.ne.s32.totalorder %s380, %s381
      %p392 = scmp.eq.s32.totalorder %s31, 0
      %p393 = por %p391, %p392
      %p394 = scmp.ne.s32.totalorder %s380, %s381
      %p395 = scmp.eq.s32.totalorder %s32, 3
      %p396 = por %p394, %p395
      %p398 = scmp.ne.s32.totalorder %s381, %s397
      %p399 = scmp.eq.s32.totalorder %s32, 0
      %p400 = por %p398, %p399
      %p401 = scmp.le.s32.totalorder 1, %s26
      %p402 = scmp.lt.s32.totalorder %s26, 5
      %p403 = pnand %p401, %p402
      %p404 = pneg %p403
      // Predicated region
      $region9: #{afp_forward.1} parent=5 // pred_check
        _
      $region10: #{afp_forward.1} parent=5 // pred_check_branch
        %406 = sbr.rel (%p403) target = $region12
      $region11: #{afp_forward.1} parent=5 // pred_region
        %s407 = ssub.s32 %s26, 1
        // Predicated region
        $region13: #{afp_forward.1} parent=11 // pred_check
          %p408 = pneg %p47
        $region14: #{afp_forward.1} parent=11 // pred_check_branch
          %410 = sbr.rel (%p408) target = $region16
        $region15: #{afp_forward.1} parent=11 // pred_region
          %412 = vsyncadd [#allocation4], 0
          %s414 = sshll.u32 %s0, 4
          %s415 = int_to_ptr.vmem [resolvable:$true] %s414
          %417 = dma.vmem_to_smem %s415, 16, [#allocation2], [#allocation4]
        $region16: #{afp_forward.1} parent=11 // pred_fallthru
          _
        // Predicated region
        $region17: #{afp_forward.1} parent=11 // pred_check
          %p418 = pneg %p94
        $region18: #{afp_forward.1} parent=11 // pred_check_branch
          %420 = sbr.rel (%p418) target = $region20
        $region19: #{afp_forward.1} parent=11 // pred_region
          _
        $region20: #{afp_forward.1} parent=11 // pred_fallthru
          _
        // Predicated region
        $region21: #{afp_forward.1} parent=11 // pred_check
          %p421 = pneg %p115
        $region22: #{afp_forward.1} parent=11 // pred_check_branch
          %423 = sbr.rel (%p421) target = $region24
        $region23: #{afp_forward.1} parent=11 // pred_region
          _
        $region24: #{afp_forward.1} parent=11 // pred_fallthru
          _
        // Predicated region
        $region25: #{afp_forward.1} parent=11 // pred_check
          %p424 = pneg %p136
        $region26: #{afp_forward.1} parent=11 // pred_check_branch
          %426 = sbr.rel (%p424) target = $region28
        $region27: #{afp_forward.1} parent=11 // pred_region
          _
        $region28: #{afp_forward.1} parent=11 // pred_fallthru
          _
        // Predicated region
        $region29: #{afp_forward.1} parent=11 // pred_check
          %p427 = pneg %p157
        $region30: #{afp_forward.1} parent=11 // pred_check_branch
          %429 = sbr.rel (%p427) target = $region32
        $region31: #{afp_forward.1} parent=11 // pred_region
          _
        $region32: #{afp_forward.1} parent=11 // pred_fallthru
          _
        // Predicated region
        $region33: #{afp_forward.1} parent=11 // pred_check
          %p430 = pneg %p178
        $region34: #{afp_forward.1} parent=11 // pred_check_branch
          %432 = sbr.rel (%p430) target = $region36
        $region35: #{afp_forward.1} parent=11 // pred_region
          _
        $region36: #{afp_forward.1} parent=11 // pred_fallthru
          _
        // Predicated region
        $region37: #{afp_forward.1} parent=11 // pred_check
          %p433 = pneg %p199
        $region38: #{afp_forward.1} parent=11 // pred_check_branch
          %435 = sbr.rel (%p433) target = $region40
        $region39: #{afp_forward.1} parent=11 // pred_region
          _
        $region40: #{afp_forward.1} parent=11 // pred_fallthru
          _
        // Predicated region
        $region41: #{afp_forward.1} parent=11 // pred_check
          %p436 = pneg %p220
        $region42: #{afp_forward.1} parent=11 // pred_check_branch
          %438 = sbr.rel (%p436) target = $region44
        $region43: #{afp_forward.1} parent=11 // pred_region
          _
        $region44: #{afp_forward.1} parent=11 // pred_fallthru
          _
        // Predicated region
        $region45: #{afp_forward.1} parent=11 // pred_check
          %p439 = pneg %p241
        $region46: #{afp_forward.1} parent=11 // pred_check_branch
          %441 = sbr.rel (%p439) target = $region48
        $region47: #{afp_forward.1} parent=11 // pred_region
          _
        $region48: #{afp_forward.1} parent=11 // pred_fallthru
          _
        // Predicated region
        $region49: #{afp_forward.1} parent=11 // pred_check
          %p442 = pneg %p262
        $region50: #{afp_forward.1} parent=11 // pred_check_branch
          %444 = sbr.rel (%p442) target = $region52
        $region51: #{afp_forward.1} parent=11 // pred_region
          _
        $region52: #{afp_forward.1} parent=11 // pred_fallthru
          _
        // Predicated region
        $region53: #{afp_forward.1} parent=11 // pred_check
          %p445 = pneg %p283
        $region54: #{afp_forward.1} parent=11 // pred_check_branch
          %447 = sbr.rel (%p445) target = $region56
        $region55: #{afp_forward.1} parent=11 // pred_region
          _
        $region56: #{afp_forward.1} parent=11 // pred_fallthru
          _
        // Predicated region
        $region57: #{afp_forward.1} parent=11 // pred_check
          %p448 = pneg %p304
        $region58: #{afp_forward.1} parent=11 // pred_check_branch
          %450 = sbr.rel (%p448) target = $region60
        $region59: #{afp_forward.1} parent=11 // pred_region
          _
        $region60: #{afp_forward.1} parent=11 // pred_fallthru
          _
        // Predicated region
        $region61: #{afp_forward.1} parent=11 // pred_check
          %p451 = pneg %p325
        $region62: #{afp_forward.1} parent=11 // pred_check_branch
          %453 = sbr.rel (%p451) target = $region64
        $region63: #{afp_forward.1} parent=11 // pred_region
          _
        $region64: #{afp_forward.1} parent=11 // pred_fallthru
          _
        // Predicated region
        $region65: #{afp_forward.1} parent=11 // pred_check
          %p454 = pneg %p346
        $region66: #{afp_forward.1} parent=11 // pred_check_branch
          %456 = sbr.rel (%p454) target = $region68
        $region67: #{afp_forward.1} parent=11 // pred_region
          _
        $region68: #{afp_forward.1} parent=11 // pred_fallthru
          _
        // Predicated region
        $region69: #{afp_forward.1} parent=11 // pred_check
          %p457 = pneg %p367
        $region70: #{afp_forward.1} parent=11 // pred_check_branch
          %459 = sbr.rel (%p457) target = $region72
        $region71: #{afp_forward.1} parent=11 // pred_region
          _
        $region72: #{afp_forward.1} parent=11 // pred_fallthru
          _
      $region12: #{afp_forward.1} parent=5 // pred_fallthru
        _
      %p460 = scmp.lt.s32.totalorder %s26, 4
      // Predicated region
      $region73: #{afp_forward.1} parent=5 // pred_check
        %p461 = pneg %p460
      $region74: #{afp_forward.1} parent=5 // pred_check_branch
        %463 = sbr.rel (%p461) target = $region76
      $region75: #{afp_forward.1} parent=5 // pred_region
        // Predicated region
        $region77: #{afp_forward.1} parent=75 // pred_check
          %p464 = pneg %p67
        $region78: #{afp_forward.1} parent=75 // pred_check_branch
          %466 = sbr.rel (%p464) target = $region80
        $region79: #{afp_forward.1} parent=75 // pred_region
          %p467 = scmp.lt.s32.totalorder %s26, 3
          %s468 = scalar_select %p467, %s26, 3
          %s469 = smul.addr %s468, 8
          %s470 = scalar_lea.vmem %s1, %s469
        $region80: #{afp_forward.1} parent=75 // pred_fallthru
          _
      $region76: #{afp_forward.1} parent=5 // pred_fallthru
        _
      %p471 = scmp.le.s32.totalorder 1, %s26
      %p472 = scmp.lt.s32.totalorder %s26, 5
      %p473 = pnand %p471, %p472
      %p474 = pneg %p473
      // Predicated region
      $region81: #{afp_forward.1} parent=5 // pred_check
        _
      $region82: #{afp_forward.1} parent=5 // pred_check_branch
        %476 = sbr.rel (%p473) target = $region84
      $region83: #{afp_forward.1} parent=5 // pred_region
        %s477 = ssub.s32 %s26, 1
        // Predicated region
        $region85: #{afp_forward.1} parent=83 // pred_check
          %p478 = pneg %p47
        $region86: #{afp_forward.1} parent=83 // pred_check_branch
          %480 = sbr.rel (%p478) target = $region88
        $region87: #{afp_forward.1} parent=83 // pred_region
          %482 = dma.done [#allocation4], 16
        $region88: #{afp_forward.1} parent=83 // pred_fallthru
          _
        %483 = sfence
        %p484 = pneg %p47
        %p485 = pneg %p44
        %p486 = scmp.lt.s32.totalorder %s31, 3
        %s487 = scalar_select %p486, %s31, 3
        %s488 = smul.addr %s487, 8
        %s489 = scalar_lea.vmem %s1, %s488
        %p490 = pneg %p73
        %p491 = pneg %p70
        %p492 = pneg %p94
        %p493 = pneg %p91
        %p494 = pneg %p115
        %p495 = pneg %p112
        %p496 = pneg %p136
        %p497 = pneg %p133
        %p498 = pneg %p157
        %p499 = pneg %p154
        %p500 = pneg %p178
        %p501 = pneg %p175
        %p502 = pneg %p199
        %p503 = pneg %p196
        %p504 = pneg %p220
        %p505 = pneg %p217
        %p506 = pneg %p241
        %p507 = pneg %p238
        %p508 = pneg %p262
        %p509 = pneg %p259
        %p510 = pneg %p283
        %p511 = pneg %p280
        %p512 = pneg %p304
        %p513 = pneg %p301
        %p514 = pneg %p325
        %p515 = pneg %p322
        %p516 = pneg %p346
        %p517 = pneg %p343
        %p518 = pneg %p367
        %p519 = pneg %p364
        %p520 = pneg %p393
        %p521 = pneg %p390
        %s522 = sand.u32 %s380, 1
        %s523 = scalar_lea.sflag [#allocation3], %s522
        %s524 = sand.u32 %s380, 1
        %s525 = smul.addr %s524, 8
        %s526 = scalar_lea.vmem [#allocation5], %s525
        %p527 = scmp.lt.s32.totalorder %s31, 3
        %s528 = scalar_select %p527, %s31, 3
        %s529 = smul.addr %s528, 8
        %s530 = scalar_lea.vmem %s1, %s529
        %s532 = sld [smem:[#allocation2]]
        %s533 = sld [smem:[#allocation2 + $0x1]]
        %s534 = sld [smem:[#allocation2 + $0x2]]
        %s535 = sld [smem:[#allocation2 + $0x3]]
        %v536 = vld [vmem:[%s530] sm:$0xff]
        %538 = vrot.lane.b32.xlu0 %v536, 1
        %v539 = vpop.permute.xlu0 %538
        %vm541 = vcmask 7168
        %v542 = vsel %vm541, -inf, %v539
        %543 = vrot.lane.b32.xlu0 %v536, 127
        %v544 = vpop.permute.xlu0 %543
        %vm546 = vcmask 1039360
        %v547 = vsel %vm546, %v544, -inf
        %v548 = vmax.f32 %v542, %v547
        %v549 = vmax.f32 %v536, %v548
        %v550 = vsel %vm541, 0.0, %v539
        %v551 = vsel %vm546, %v544, 0.0
        %v552 = vadd.f32 %v536, %v550
        %v553 = vadd.f32 %v552, %v551
        %v554 = vmul.f32 %v553, 0.33333334
        %v555 = vstv %s535
        %v556 = vmul.f32 %v536, %v555
        %v557 = vstv %s532
        %v558 = vmul.f32 %v549, %v557
        %v559 = vadd.f32 %v556, %v558
        %v560 = vstv %s533
        %v561 = vmul.f32 %v554, %v560
        %v562 = vadd.f32 %v559, %v561
        %v563 = vpack.c.bf16 %v536, %v536
        %v564 = vld [vmem:[%s2] sm:$0x1]
        %v565 = vld [vmem:[%s3] sm:$0x3]
        %567 = vset.pattern.permute.xlu0 0
        %568 = vperm.xlu0 %567, %v565
        %v569 = vpop.permute.xlu0 %568
        %vm571 = vcmask 64512
        %v573 = vsel %vm571, %v564, 0
        %vm575 = vcmask 1043456
        %v577 = vsel %vm575, %v563, 0
        %579 = vmatpush.bf16.msra.mxu0 0
        %580 = vmatpush.bf16.msra.mxu0 0
        %581 = vmatpush.bf16.msra.mxu0 0
        %582 = vmatpush.bf16.msra.mxu0 0
        %583 = vmatpush.bf16.msra.mxu0 0
        %584 = vmatpush.bf16.msra.mxu0 0
        %585 = vmatpush.bf16.msra.mxu0 0
        %586 = vmatpush.bf16.msra.mxu0 %v577
        %587 = vmatmul.bf16.gmra.mxu0 %v573
        %v588 = vpop.f32.mrf.mxu0
        %v589 = vadd.f32 %v569, %v588
        %v590 = vpop.f32.mrf.mxu0
        %591 = vdwg.mxu0
        %v592 = vpack.c.bf16 %v589, %v589
        %v594 = vunpack.c.l.b16 %v592
        %v595 = vpack.c.b16 %v594, %v594
        %596 = vrot.lane.b32.xlu0 %v595, 1
        %v597 = vpop.permute.xlu0 %596
        %v600 = vsel %vm541, 0, %v597
        %601 = vrot.lane.b32.xlu0 %v595, 127
        %v602 = vpop.permute.xlu0 %601
        %v604 = vsel %vm546, %v602, 0
        %v605 = vrot.slane %v595, 7
        %v607 = vrot.slane %v604, 6
        %vm608 = vcmask 1040384
        %v610 = vsel %vm608, %v600, %v605
        %vm611 = vcmask 1041408
        %v613 = vsel %vm611, %v610, %v607
        %v614 = vld [vmem:[%s4] sm:$0x1]
        %v615 = vld [vmem:[%s5] sm:$0x3]
        %617 = vset.pattern.permute.xlu0 0
        %618 = vperm.xlu0 %617, %v615
        %v619 = vpop.permute.xlu0 %618
        %vm621 = vcmask 48128
        %v623 = vsel %vm621, %v614, 0
        %vm625 = vcmask 1042432
        %v626 = vsel %vm625, %v613, 0
        %628 = vmatpush.bf16.msra.mxu0 0
        %629 = vmatpush.bf16.msra.mxu0 0
        %630 = vmatpush.bf16.msra.mxu0 0
        %631 = vmatpush.bf16.msra.mxu0 0
        %632 = vmatpush.bf16.msra.mxu0 0
        %633 = vmatpush.bf16.msra.mxu0 0
        %634 = vmatpush.bf16.msra.mxu0 0
        %635 = vmatpush.bf16.msra.mxu0 %v626
        %636 = vmatmul.bf16.gmra.mxu0 %v623
        %v637 = vpop.f32.mrf.mxu0
        %v638 = vadd.f32 %v619, %v637
        %v639 = vpop.f32.mrf.mxu0
        %640 = vdwg.mxu0
        %v641 = vpack.c.bf16 %v638, %v638
        %v643 = vunpack.c.l.b16 %v641
        %v644 = vpack.c.b16 %v643, %v643
        %645 = vrot.lane.b32.xlu0 %v644, 1
        %v646 = vpop.permute.xlu0 %645
        %v648 = vsel %vm541, 0, %v646
        %649 = vrot.lane.b32.xlu0 %v644, 127
        %v650 = vpop.permute.xlu0 %649
        %v652 = vsel %vm546, %v650, 0
        %v653 = vrot.slane %v644, 7
        %v655 = vrot.slane %v652, 6
        %v657 = vsel %vm608, %v648, %v653
        %v659 = vsel %vm611, %v657, %v655
        %v660 = vld [vmem:[%s6] sm:$0x1]
        %v661 = vld [vmem:[%s7] sm:$0x3]
        %663 = vset.pattern.permute.xlu0 0
        %664 = vperm.xlu0 %663, %v661
        %v665 = vpop.permute.xlu0 %664
        %v668 = vsel %vm621, %v660, 0
        %v670 = vsel %vm625, %v659, 0
        %672 = vmatpush.bf16.msra.mxu0 0
        %673 = vmatpush.bf16.msra.mxu0 0
        %674 = vmatpush.bf16.msra.mxu0 0
        %675 = vmatpush.bf16.msra.mxu0 0
        %676 = vmatpush.bf16.msra.mxu0 0
        %677 = vmatpush.bf16.msra.mxu0 0
        %678 = vmatpush.bf16.msra.mxu0 0
        %679 = vmatpush.bf16.msra.mxu0 %v670
        %680 = vmatmul.bf16.gmra.mxu0 %v668
        %v681 = vpop.f32.mrf.mxu0
        %v682 = vadd.f32 %v665, %v681
        %v683 = vpop.f32.mrf.mxu0
        %684 = vdwg.mxu0
        %v685 = vld [vmem:[%s8] sm:$0x7]
        %v686 = vld [vmem:[%s9] sm:$0x3f]
        %688 = vset.pattern.permute.xlu0 0
        %689 = vperm.xlu0 %688, %v686
        %v690 = vpop.permute.xlu0 %689
        %v693 = vsel %vm571, %v685, 0
        %695 = vmatpush.bf16.msra.mxu0 0
        %696 = vmatpush.bf16.msra.mxu0 0
        %697 = vmatpush.bf16.msra.mxu0 0
        %698 = vmatpush.bf16.msra.mxu0 0
        %699 = vmatpush.bf16.msra.mxu0 0
        %700 = vmatpush.bf16.msra.mxu0 0
        %701 = vmatpush.bf16.msra.mxu0 0
        %702 = vmatpush.bf16.msra.mxu0 %v577
        %703 = vmatmul.bf16.gmra.mxu0 %v693
        %v704 = vpop.f32.mrf.mxu0
        %v705 = vadd.f32 %v690, %v704
        %v706 = vpop.f32.mrf.mxu0
        %707 = vdwg.mxu0
        %v708 = vpack.c.bf16 %v705, %v705
        %v710 = vunpack.c.l.b16 %v708
        %v711 = vpack.c.b16 %v710, %v710
        %712 = vrot.lane.b32.xlu0 %v711, 1
        %v713 = vpop.permute.xlu0 %712
        %v715 = vsel %vm541, 0, %v713
        %716 = vrot.lane.b32.xlu0 %v711, 127
        %v717 = vpop.permute.xlu0 %716
        %v719 = vsel %vm546, %v717, 0
        %v720 = vrot.slane %v711, 5
        %v722 = vrot.slane %v719, 2
        %v724 = vsel %vm625, %v715, %v720
        %vm725 = vcmask 1045504
        %v727 = vsel %vm725, %v724, %v722
        %v729 = vld [vmem:[%s10] sm:$0x7]
        %v730 = vld [vmem:[%s11] sm:$0x3f]
        %732 = vset.pattern.permute.xlu0 0
        %733 = vperm.xlu0 %732, %v730
        %v734 = vpop.permute.xlu0 %733
        %vm736 = vcmask 146432
        %v738 = vsel %vm736, %v729, 0
        %v740 = vsel %vm608, %v722, 0
        %742 = vmatpush.bf16.msra.mxu0 0
        %743 = vmatpush.bf16.msra.mxu0 0
        %744 = vmatpush.bf16.msra.mxu0 0
        %745 = vmatpush.bf16.msra.mxu0 0
        %746 = vmatpush.bf16.msra.mxu0 0
        %747 = vmatpush.bf16.msra.mxu0 0
        %748 = vmatpush.bf16.msra.mxu0 %v740
        %749 = vmatpush.bf16.msra.mxu0 %v727
        %750 = vmatmul.bf16.gmra.mxu0 %v738
        %v751 = vpop.f32.mrf.mxu0
        %v752 = vadd.f32 %v734, %v751
        %v753 = vpop.f32.mrf.mxu0
        %754 = vdwg.mxu0
        %v755 = vsel %vm611, %v682, 0.0
        %756 = vadd.xlane.f32.xlu0 %v755
        %v757 = vpop.xlane.xlu0 %756
        %v758 = vmul.f32 %v757, 0.0078125
        %v759 = vsel %vm725, %v752, 0.0
        %760 = vadd.xlane.f32.xlu0 %v759
        %v761 = vpop.xlane.xlu0 %760
        %v762 = vmul.f32 %v761, 0.0078125
        %v764 = vrot.slane %v762, 6
        %v766 = vsel %vm611, %v758, %v764
        %v767 = vld [vmem:[%s12] sm:$0xff]
        %769 = vset.pattern.permute.xlu0 0
        %770 = vperm.xlu0 %769, %v766
        %v771 = vpop.permute.xlu0 %770
        %v773 = vmul.f32 %v767, %v771
        %vm774 = vcmask 31744
        %v775 = vsel %vm774, %v773, 0.0
        %v776 = vrot.slane %v775, 4
        %v777 = vadd.f32 %v775, %v776
        %v778 = vrot.slane %v777, 2
        %v779 = vadd.f32 %v777, %v778
        %v780 = vrot.slane %v779, 1
        %v781 = vadd.f32 %v779, %v780
        %v782 = vld [vmem:[%s13] sm:$0x1]
        %v783 = vadd.f32 %v781, %v782
        %v784 = vmax.f32 %v783, 0.0
        %v785 = vld [vmem:[%s14] sm:$0xff]
        %v786 = vperm.slane %v784, 0
        %v787 = vmul.f32 %v785, %v786
        %v788 = vsel %vm774, %v787, 0.0
        %789 = vadd.xlane.f32.xlu0 %v788
        %v790 = vpop.xlane.xlu0 %789
        %v791 = vld [vmem:[%s15] sm:$0xff]
        %v792 = vadd.f32 %v790, %v791
        %v793 = vxor.u32 %v792, 2147483648
        %v794 = vmul.f32 %v793, 1.442695
        %v795 = vpow.pop %v794
        %v796 = vadd.f32 %v795, 1.0
        %v797 = vrcp.pop %v796
        %v798 = vmul.f32 %v796, %v797
        %v799 = vsub.f32 1.0, %v798
        %v800 = vmul.f32 %v797, %v799
        %v801 = vadd.f32 %v797, %v800
        %vm802 = vweird.f32 %v796
        %vm803 = vweird.f32 %v797
        %vm804 = vmor %vm802, %vm803
        %v805 = vsel %vm804, %v797, %v801
        %v806 = vand.u32 2147483647, %v796
        %vm807 = vcmp.eq.f32.partialorder %v806, 8.507059e+37
        %v808 = vand.u32 %v796, 2147483648
        %v809 = vor.u32 1.1754944e-38, %v808
        %v810 = vsel %vm807, %v809, %v805
        %v811 = vmul.f32 1.0, %v810
        %813 = vset.pattern.permute.xlu0 0
        %814 = vperm.xlu0 %813, %v811
        %v815 = vpop.permute.xlu0 %814
        %v817 = vmul.f32 %v815, %v682
        %v818 = vstv %s534
        %v819 = vmul.f32 %v818, %v817
        %v820 = vadd.f32 %v562, %v819
        %821 = vst [vmem:[%s526] sm:$0x3] %v820
        %v823 = vrot.slane %v752, 6
        %v825 = vmul.f32 %v815, %v823
        %v826 = vmul.f32 %v818, %v825
        %v827 = vadd.f32 %v562, %v826
        %828 = vst [vmem:[%s526] sm:$0xfc] %v827
        %s829 = sand.u32 %s380, 1
        %s830 = scalar_lea.sflag [#allocation3], %s829
        %s831 = sand.u32 %s380, 1
        %s832 = smul.addr %s831, 8
        %s833 = scalar_lea.vmem [#allocation5], %s832
        // Predicated region
        $region89: #{afp_forward.1} parent=83 // pred_check
          %p834 = pneg %p390
        $region90: #{afp_forward.1} parent=83 // pred_check_branch
          %836 = sbr.rel (%p834) target = $region92
        $region91: #{afp_forward.1} parent=83 // pred_region
          %838 = vsyncadd %s830, 0
          %s839 = smul.addr %s31, 8
          %s840 = scalar_lea.hbm %s16, %s839
          %s842 = sshll.u32 %s833, 4
          %s843 = int_to_ptr.vmem [resolvable:$true] %s842
          %s844 = sshll.u32 %s840, 4
          %s845 = int_to_ptr.hbm [resolvable:$true] %s844
          %847 = dma.vmem_to_hbm [thread:$0]  %s843, 128, %s845, %s830
        $region92: #{afp_forward.1} parent=83 // pred_fallthru
          _
      $region84: #{afp_forward.1} parent=5 // pred_fallthru
        _
      %p848 = scmp.le.s32.totalorder 2, %s26
      // Predicated region
      $region93: #{afp_forward.1} parent=5 // pred_check
        %p849 = pneg %p848
      $region94: #{afp_forward.1} parent=5 // pred_check_branch
        %851 = sbr.rel (%p849) target = $region96
      $region95: #{afp_forward.1} parent=5 // pred_region
        %s852 = ssub.s32 %s26, 2
        // Predicated region
        $region97: #{afp_forward.1} parent=95 // pred_check
          %p853 = pneg %p396
        $region98: #{afp_forward.1} parent=95 // pred_check_branch
          %855 = sbr.rel (%p853) target = $region100
        $region99: #{afp_forward.1} parent=95 // pred_region
          %s856 = sand.u32 %s381, 1
          %s857 = scalar_lea.sflag [#allocation3], %s856
          %s858 = sand.u32 %s381, 1
          %s859 = smul.addr %s858, 8
          %s860 = scalar_lea.vmem [#allocation5], %s859
          %862 = dma.done %s857, 128
        $region100: #{afp_forward.1} parent=95 // pred_fallthru
          _
      $region96: #{afp_forward.1} parent=5 // pred_fallthru
        _
    $region6: #{afp_forward.1} parent=1 // loop_footer
      %s30 = sadd.s32 1, %s26
    $region7: #{afp_forward.1} parent=1 // loop_footer_branch
      %25 = sbr.rel target = $region3
    $region8: #{afp_forward.1} parent=1 // loop_exit
      _
    %863 = vsyncpa [#allocation3], 1
    %s864 = scalar_lea.sflag [#allocation3], 1
    %865 = vsyncpa %s864, 1
    %866 = vsyncpa [#allocation4], 1
    %s867 = scalar_lea.sflag [#allocation4], 1
    %868 = vsyncpa %s867, 1

</llo_original>
